<compile_context>
chip_gen: v7x
topology: tpu7x:2x2x1
jax: 0.10.0
libtpu: 0.0.40
codegen_flags: <defaults>
</compile_context>

<pallas_src>
import numpy as np
import jax
import jax.numpy as jnp
from jax.experimental import pallas as pl
from jax.experimental.pallas import tpu as pltpu  # noqa: F401  (not needed at these sizes)

_NQ = 4            # qubits
_DIM = 1 << _NQ    # 16 statevector amplitudes


# ---------------------------------------------------------------------------
# Compile-time constants (qubit 0 = most-significant bit of the state index)
# ---------------------------------------------------------------------------
def _bit(j, q):
    return (j >> (_NQ - 1 - q)) & 1


_SELC = np.array([[1.0 if _bit(j, q) == 0 else 0.0 for j in range(_DIM)]
                  for q in range(_NQ)], np.float32)            # (4,16)
_SELS = (1.0 - _SELC).astype(np.float32)                       # (4,16)
_ZSGN_T = np.array([[1.0 - 2.0 * _bit(j, q) for q in range(_NQ)]
                    for j in range(_DIM)], np.float32)          # (16,4)


def _cnot_mat(control, target):
    mat = np.zeros((_DIM, _DIM), np.float32)
    for j in range(_DIM):
        bits = [_bit(j, q) for q in range(_NQ)]
        if bits[control] == 1:
            bits[target] ^= 1
        j2 = 0
        for b in bits:
            j2 = (j2 << 1) | b
        mat[j2, j] = 1.0
    return mat


_CNOT_RING_NP = [_cnot_mat(q, (q + 1) % _NQ) for q in range(_NQ)]


# ---------------------------------------------------------------------------
# Variational unitary (depends only on theta -> precomputed outside the kernel)
# ---------------------------------------------------------------------------
def _ry_full(theta, q):
    c = jnp.cos(0.5 * theta)
    s = jnp.sin(0.5 * theta)
    ry = jnp.stack([jnp.stack([c, -s]), jnp.stack([s, c])])     # (2,2)
    return jnp.kron(jnp.kron(jnp.eye(1 << q, dtype=jnp.float32), ry),
                    jnp.eye(1 << (_NQ - 1 - q), dtype=jnp.float32))


def build_variational_unitary(theta):
    """Fold dl layers of (RY on each qubit + CNOT ring) into one real 16x16
    matrix acting on column state vectors.  Recompute only when theta changes
    (e.g. after an optimizer step), not per forward pass."""
    u = jnp.eye(_DIM, dtype=jnp.float32)
    for l in range(theta.shape[0]):
        for q in range(_NQ):
            u = _ry_full(theta[l, q], q) @ u
        for q in range(_NQ):
            u = jnp.asarray(_CNOT_RING_NP[q]) @ u
    return u


# ---------------------------------------------------------------------------
# Fused Pallas kernel: whole Model2 forward in one call
# ---------------------------------------------------------------------------
def _model2_kernel(x_ref, w1_ref, b1_ref, u_ref, selc_ref, sels_ref,
                   zsgnt_ref, w2_ref, b2_ref, o_ref):
    # Linear(784, 4) + tanh  -- lane-dense VPU reduction (no MXU at M=1).
    pre1 = jnp.sum(w1_ref[...] * x_ref[...], axis=1, keepdims=True)      # (4,1)
    h = jnp.tanh(pre1 + b1_ref[...])                                     # (4,1)

    # qubitEncoder: |psi0>_j = prod_i (cos(h_i/2) if bit_i(j)=0 else sin(h_i/2))
    half = 0.5 * h
    c = jnp.cos(half)                                                    # (4,1)
    s = jnp.sin(half)                                                    # (4,1)
    f = selc_ref[...] * c + sels_ref[...] * s                            # (4,16)
    state = f[0:1, :] * f[1:2, :] * f[2:3, :] * f[3:4, :]                # (1,16)

    # Variational circuit: psi = U @ psi0 (broadcast-multiply + lane reduce).
    psi = jnp.sum(u_ref[...] * state, axis=1, keepdims=True)             # (16,1)

    # <Z_i> readout: signed sum of probabilities.
    prob = psi * psi                                                     # (16,1)
    z = jnp.sum(zsgnt_ref[...] * prob, axis=0, keepdims=True)            # (1,4)

    # Linear(4, 2) + tanh.
    pre2 = jnp.sum(w2_ref[...] * z, axis=1, keepdims=True)               # (2,1)
    o_ref[...] = jnp.tanh(pre2 + b2_ref[...])                            # (2,1)


def model2_forward(x, kp):
    """x: (1, 784) f32 -> (2,) f32.  Exactly one pallas_call; no grid needed:
    every operand is a tiny full-array VMEM block."""
    out = pl.pallas_call(
        _model2_kernel,
        out_shape=jax.ShapeDtypeStruct((2, 1), jnp.float32),
    )(x, kp["w1"], kp["b1"], kp["u"], kp["selc"], kp["sels"],
      kp["zsgn_t"], kp["w2"], kp["b2"])
    return out.reshape(2)


# ---------------------------------------------------------------------------
# Parameters (PyTorch (out_features, in_features) layout -> already lane-dense)
# ---------------------------------------------------------------------------
def init_params(key, dl=4):
    k1, k2, k3, k4, k5 = jax.random.split(key, 5)
    lim1 = 1.0 / jnp.sqrt(784.0)
    lim2 = 1.0 / jnp.sqrt(4.0)
    return {
        "w1": jax.random.uniform(k1, (4, 784), jnp.float32, -lim1, lim1),
        "b1": jax.random.uniform(k2, (4,), jnp.float32, -lim1, lim1),
        "theta": jax.random.uniform(k3, (dl, 4), jnp.float32, 0.0, 2.0 * jnp.pi),
        "w2": jax.random.uniform(k4, (2, 4), jnp.float32, -lim2, lim2),
        "b2": jax.random.uniform(k5, (2,), jnp.float32, -lim2, lim2),
    }


def prepare_kernel_params(params):
    """One-time packing into kernel-ready f32 layouts (done outside the hot path)."""
    return {
        "w1": params["w1"].astype(jnp.float32),                    # (4, 784)
        "b1": params["b1"].reshape(_NQ, 1).astype(jnp.float32),    # (4, 1)
        "u": build_variational_unitary(params["theta"]),           # (16, 16)
        "selc": jnp.asarray(_SELC),                                # (4, 16)
        "sels": jnp.asarray(_SELS),                                # (4, 16)
        "zsgn_t": jnp.asarray(_ZSGN_T),                            # (16, 4)
        "w2": params["w2"].astype(jnp.float32),                    # (2, 4)
        "b2": params["b2"].reshape(2, 1).astype(jnp.float32),      # (2, 1)
    }


# ---------------------------------------------------------------------------
# Pure-JAX reference (original gate-by-gate simulation) for a sanity check
# ---------------------------------------------------------------------------
def _ref_apply_ry(state, qubit, theta):
    c, s = jnp.cos(theta / 2.0), jnp.sin(theta / 2.0)
    st = jnp.moveaxis(state.reshape((2,) * _NQ), qubit, 0)
    a0, a1 = st[0], st[1]
    st = jnp.stack([c * a0 - s * a1, s * a0 + c * a1], axis=0)
    return jnp.moveaxis(st, 0, qubit).reshape(-1)


def _ref_apply_cnot(state, control, target):
    st = jnp.moveaxis(state.reshape((2,) * _NQ), (control, target), (0, 1))
    st = st.at[1].set(st[1, ::-1])
    return jnp.moveaxis(st, (0, 1), (control, target)).reshape(-1)


def _ref_z_exp(state, qubit):
    p = jnp.moveaxis((state * state).reshape((2,) * _NQ), qubit, 0)
    return jnp.sum(p[0]) - jnp.sum(p[1])


def _reference_forward(x, params):
    h = jnp.tanh(x @ params["w1"].T + params["b1"]).reshape(_NQ)
    state = jnp.zeros((_DIM,), jnp.float32).at[0].set(1.0)
    for q in range(_NQ):
        state = _ref_apply_ry(state, q, h[q])
    for l in range(params["theta"].shape[0]):
        for q in range(_NQ):
            state = _ref_apply_ry(state, q, params["theta"][l, q])
        for q in range(_NQ):
            state = _ref_apply_cnot(state, q, (q + 1) % _NQ)
    z = jnp.stack([_ref_z_exp(state, q) for q in range(_NQ)])
    return jnp.tanh(z @ params["w2"].T + params["b2"])


# ---------------------------------------------------------------------------
if __name__ == "__main__":
    key = jax.random.PRNGKey(0)
    kx, kparam = jax.random.split(key)
    params = init_params(kparam, dl=4)
    x = jax.random.normal(kx, (1, 784), jnp.float32)   # one flattened 28x28 image

    kp = prepare_kernel_params(params)                 # includes the folded 16x16 unitary
    out = model2_forward(x, kp)
    out = jax.block_until_ready(out)
    assert out.shape == (2,)

    ref = jax.block_until_ready(_reference_forward(x, params))
    assert jnp.allclose(out, ref, atol=1e-4), (out, ref)

    print("KERNEL_OK")
</pallas_src>

<mosaic_0001>
module attributes {stable_mosaic.version = 11 : i64} {
  func.func @_model2_kernel(%arg0: memref<1x784xf32, #tpu.memory_space<vmem>>, %arg1: memref<4x784xf32, #tpu.memory_space<vmem>>, %arg2: memref<4x1xf32, #tpu.memory_space<vmem>>, %arg3: memref<16x16xf32, #tpu.memory_space<vmem>>, %arg4: memref<4x16xf32, #tpu.memory_space<vmem>>, %arg5: memref<4x16xf32, #tpu.memory_space<vmem>>, %arg6: memref<16x4xf32, #tpu.memory_space<vmem>>, %arg7: memref<2x4xf32, #tpu.memory_space<vmem>>, %arg8: memref<2x1xf32, #tpu.memory_space<vmem>>, %arg9: memref<2x1xf32, #tpu.memory_space<vmem>>) attributes {dimension_semantics = [], scalar_prefetch = 0 : i64, scratch_operands = 0 : i64, tpu.core_type = #tpu.core_type<tc>} {
    %c0 = arith.constant 0 : index
    %c0_0 = arith.constant 0 : index
    %0 = vector.load %arg1[%c0, %c0_0] : memref<4x784xf32, #tpu.memory_space<vmem>>, vector<4x784xf32>
    %c0_1 = arith.constant 0 : index
    %c0_2 = arith.constant 0 : index
    %1 = vector.load %arg0[%c0_1, %c0_2] : memref<1x784xf32, #tpu.memory_space<vmem>>, vector<1x784xf32>
    %2 = vector.broadcast %1 : vector<1x784xf32> to vector<4x784xf32>
    %3 = arith.mulf %0, %2 : vector<4x784xf32>
    %cst = arith.constant dense<0.000000e+00> : vector<4xf32>
    %4 = vector.multi_reduction <add>, %3, %cst [1] : vector<4x784xf32> to vector<4xf32>
    %5 = vector.shape_cast %4 : vector<4xf32> to vector<4x1xf32>
    %c0_3 = arith.constant 0 : index
    %c0_4 = arith.constant 0 : index
    %6 = vector.load %arg2[%c0_3, %c0_4] : memref<4x1xf32, #tpu.memory_space<vmem>>, vector<4x1xf32>
    %7 = arith.addf %5, %6 : vector<4x1xf32>
    %8 = math.tanh %7 : vector<4x1xf32>
    %cst_5 = arith.constant 5.000000e-01 : f32
    %9 = vector.broadcast %cst_5 : f32 to vector<4x1xf32>
    %10 = arith.mulf %9, %8 : vector<4x1xf32>
    %11 = math.cos %10 : vector<4x1xf32>
    %12 = math.sin %10 : vector<4x1xf32>
    %c0_6 = arith.constant 0 : index
    %c0_7 = arith.constant 0 : index
    %13 = vector.load %arg4[%c0_6, %c0_7] : memref<4x16xf32, #tpu.memory_space<vmem>>, vector<4x16xf32>
    %14 = vector.broadcast %11 : vector<4x1xf32> to vector<4x16xf32>
    %15 = arith.mulf %13, %14 : vector<4x16xf32>
    %c0_8 = arith.constant 0 : index
    %c0_9 = arith.constant 0 : index
    %16 = vector.load %arg5[%c0_8, %c0_9] : memref<4x16xf32, #tpu.memory_space<vmem>>, vector<4x16xf32>
    %17 = vector.broadcast %12 : vector<4x1xf32> to vector<4x16xf32>
    %18 = arith.mulf %16, %17 : vector<4x16xf32>
    %19 = arith.addf %15, %18 : vector<4x16xf32>
    %20 = vector.extract_strided_slice %19 {offsets = [0, 0], sizes = [1, 16], strides = [1, 1]} : vector<4x16xf32> to vector<1x16xf32>
    %21 = vector.extract_strided_slice %19 {offsets = [1, 0], sizes = [1, 16], strides = [1, 1]} : vector<4x16xf32> to vector<1x16xf32>
    %22 = arith.mulf %20, %21 : vector<1x16xf32>
    %23 = vector.extract_strided_slice %19 {offsets = [2, 0], sizes = [1, 16], strides = [1, 1]} : vector<4x16xf32> to vector<1x16xf32>
    %24 = arith.mulf %22, %23 : vector<1x16xf32>
    %25 = vector.extract_strided_slice %19 {offsets = [3, 0], sizes = [1, 16], strides = [1, 1]} : vector<4x16xf32> to vector<1x16xf32>
    %26 = arith.mulf %24, %25 : vector<1x16xf32>
    %c0_10 = arith.constant 0 : index
    %c0_11 = arith.constant 0 : index
    %27 = vector.load %arg3[%c0_10, %c0_11] : memref<16x16xf32, #tpu.memory_space<vmem>>, vector<16x16xf32>
    %28 = vector.broadcast %26 : vector<1x16xf32> to vector<16x16xf32>
    %29 = arith.mulf %27, %28 : vector<16x16xf32>
    %cst_12 = arith.constant dense<0.000000e+00> : vector<16xf32>
    %30 = vector.multi_reduction <add>, %29, %cst_12 [1] : vector<16x16xf32> to vector<16xf32>
    %31 = vector.shape_cast %30 : vector<16xf32> to vector<16x1xf32>
    %32 = arith.mulf %31, %31 : vector<16x1xf32>
    %c0_13 = arith.constant 0 : index
    %c0_14 = arith.constant 0 : index
    %33 = vector.load %arg6[%c0_13, %c0_14] : memref<16x4xf32, #tpu.memory_space<vmem>>, vector<16x4xf32>
    %34 = vector.broadcast %32 : vector<16x1xf32> to vector<16x4xf32>
    %35 = arith.mulf %33, %34 : vector<16x4xf32>
    %cst_15 = arith.constant dense<0.000000e+00> : vector<4xf32>
    %36 = vector.multi_reduction <add>, %35, %cst_15 [0] : vector<16x4xf32> to vector<4xf32>
    %37 = vector.shape_cast %36 : vector<4xf32> to vector<1x4xf32>
    %c0_16 = arith.constant 0 : index
    %c0_17 = arith.constant 0 : index
    %38 = vector.load %arg7[%c0_16, %c0_17] : memref<2x4xf32, #tpu.memory_space<vmem>>, vector<2x4xf32>
    %39 = vector.broadcast %37 : vector<1x4xf32> to vector<2x4xf32>
    %40 = arith.mulf %38, %39 : vector<2x4xf32>
    %cst_18 = arith.constant dense<0.000000e+00> : vector<2xf32>
    %41 = vector.multi_reduction <add>, %40, %cst_18 [1] : vector<2x4xf32> to vector<2xf32>
    %42 = vector.shape_cast %41 : vector<2xf32> to vector<2x1xf32>
    %c0_19 = arith.constant 0 : index
    %c0_20 = arith.constant 0 : index
    %43 = vector.load %arg8[%c0_19, %c0_20] : memref<2x1xf32, #tpu.memory_space<vmem>>, vector<2x1xf32>
    %44 = arith.addf %42, %43 : vector<2x1xf32>
    %45 = math.tanh %44 : vector<2x1xf32>
    %c0_21 = arith.constant 0 : index
    %c0_22 = arith.constant 0 : index
    %46 = vector.load %arg9[%c0_21, %c0_22] : memref<2x1xf32, #tpu.memory_space<vmem>>, vector<2x1xf32>
    tpu.vector_store %arg9[%c0_21, %c0_22], %45 {strides = array<i32>} : memref<2x1xf32, #tpu.memory_space<vmem>>, vector<2x1xf32>,
    return
  }
}

</mosaic_0001>

<llo_original>
// kernel: tpu_custom_call.1
$region0: #{tpu_custom_call.1}
  #allocation0 [shape = 'u32[]', space=smem, size = 0x4, offset = 0x4, fixed_abs, tag = 'smem constant byte address 0x4 - core index']
  #allocation1 [shape = 'u32[144,128]{1,0:T(1,128)}', space=vmem, size = 0x12000, scoped, tag = 'internal scratch']
  %s0 = inlined_call_operand.hbm [shape: f32[1,784], index: 0, kind: input, shape index: {}]
  %s1 = inlined_call_operand.vmem [shape: f32[4,784], index: 1, kind: input, shape index: {}]
  %s2 = inlined_call_operand.vmem [shape: f32[4,1], index: 2, kind: input, shape index: {}]
  %s3 = inlined_call_operand.hbm [shape: f32[16,16], index: 3, kind: input, shape index: {}]
  %s4 = inlined_call_operand.vmem [shape: f32[4,16], index: 4, kind: input, shape index: {}]
  %s5 = inlined_call_operand.vmem [shape: f32[4,16], index: 5, kind: input, shape index: {}]
  %s6 = inlined_call_operand.vmem [shape: f32[16,4], index: 6, kind: input, shape index: {}]
  %s7 = inlined_call_operand.vmem [shape: f32[2,4], index: 7, kind: input, shape index: {}]
  %s8 = inlined_call_operand.vmem [shape: f32[2,1], index: 8, kind: input, shape index: {}]
  %s9 = inlined_call_operand.vmem [shape: f32[2,1], index: 9, kind: output, shape index: {}]
  %s10 = sld [smem:[#allocation0]]
  $region54: #{tpu_custom_call.1} parent=0
    _
  %s12 = ssub.s32 1, %s10
  %s13 = scalar_select 0, %s12, %s10
  $region1: #{tpu_custom_call.1} parent=0
    #allocation2 [shape = 'u8[3584]{0}', space=vmem, size = 0x1000, scoped, tag = 'input window, operand 0, single buffered']
    #allocation3 [shape = 's32[1]{0}', space=sflag, size = 0x4, scoped, tag = 'scoped memory for tpu_custom_call.1']
    #allocation4 [shape = 'u8[8192]{0}', space=vmem, size = 0x2000, scoped, tag = 'input window, operand 3, single buffered']
    #allocation5 [shape = 's32[1]{0}', space=sflag, size = 0x4, scoped, tag = 'scoped memory for tpu_custom_call.1']
    %14 = vsyncpa [#allocation3], 0
    %15 = vsyncpa [#allocation5], 0
    // Predicated region
    $region2: #{tpu_custom_call.1} parent=1 // pred_check
      _
    $region3: #{tpu_custom_call.1} parent=1 // pred_check_branch
      %17 = sbr.rel (0) target = $region5
    $region4: #{tpu_custom_call.1} parent=1 // pred_region
      %s19 = ssub.s32 112, 112
      %20 = vsyncadd [#allocation3], %s19
      %s22 = sshll.u32 [#allocation2], 4
      %s23 = int_to_ptr.vmem [resolvable:$true] %s22
      %25 = dma.hbm_to_vmem [thread:$0]  %s0, 112, %s23, [#allocation3]
    $region5: #{tpu_custom_call.1} parent=1 // pred_fallthru
      _
    // Predicated region
    $region6: #{tpu_custom_call.1} parent=1 // pred_check
      _
    $region7: #{tpu_custom_call.1} parent=1 // pred_check_branch
      %27 = sbr.rel (0) target = $region9
    $region8: #{tpu_custom_call.1} parent=1 // pred_region
      _
    $region9: #{tpu_custom_call.1} parent=1 // pred_fallthru
      _
    // Predicated region
    $region10: #{tpu_custom_call.1} parent=1 // pred_check
      _
    $region11: #{tpu_custom_call.1} parent=1 // pred_check_branch
      %29 = sbr.rel (0) target = $region13
    $region12: #{tpu_custom_call.1} parent=1 // pred_region
      _
    $region13: #{tpu_custom_call.1} parent=1 // pred_fallthru
      _
    // Predicated region
    $region14: #{tpu_custom_call.1} parent=1 // pred_check
      _
    $region15: #{tpu_custom_call.1} parent=1 // pred_check_branch
      %31 = sbr.rel (0) target = $region17
    $region16: #{tpu_custom_call.1} parent=1 // pred_region
      %s33 = ssub.s32 256, 256
      %34 = vsyncadd [#allocation5], %s33
      %s35 = sshll.u32 [#allocation4], 4
      %s36 = int_to_ptr.vmem [resolvable:$true] %s35
      %41 = dma.hbm_to_vmem [thread:$0]  %s3, 256, %s36, [#allocation5], 128, 128, 8
    $region17: #{tpu_custom_call.1} parent=1 // pred_fallthru
      _
    // Predicated region
    $region18: #{tpu_custom_call.1} parent=1 // pred_check
      _
    $region19: #{tpu_custom_call.1} parent=1 // pred_check_branch
      %43 = sbr.rel (0) target = $region21
    $region20: #{tpu_custom_call.1} parent=1 // pred_region
      _
    $region21: #{tpu_custom_call.1} parent=1 // pred_fallthru
      _
    // Predicated region
    $region22: #{tpu_custom_call.1} parent=1 // pred_check
      _
    $region23: #{tpu_custom_call.1} parent=1 // pred_check_branch
      %45 = sbr.rel (0) target = $region25
    $region24: #{tpu_custom_call.1} parent=1 // pred_region
      _
    $region25: #{tpu_custom_call.1} parent=1 // pred_fallthru
      _
    // Predicated region
    $region26: #{tpu_custom_call.1} parent=1 // pred_check
      _
    $region27: #{tpu_custom_call.1} parent=1 // pred_check_branch
      %47 = sbr.rel (0) target = $region29
    $region28: #{tpu_custom_call.1} parent=1 // pred_region
      _
    $region29: #{tpu_custom_call.1} parent=1 // pred_fallthru
      _
    // Predicated region
    $region30: #{tpu_custom_call.1} parent=1 // pred_check
      _
    $region31: #{tpu_custom_call.1} parent=1 // pred_check_branch
      %49 = sbr.rel (0) target = $region33
    $region32: #{tpu_custom_call.1} parent=1 // pred_region
      _
    $region33: #{tpu_custom_call.1} parent=1 // pred_fallthru
      _
    // Predicated region
    $region34: #{tpu_custom_call.1} parent=1 // pred_check
      _
    $region35: #{tpu_custom_call.1} parent=1 // pred_check_branch
      %51 = sbr.rel (0) target = $region37
    $region36: #{tpu_custom_call.1} parent=1 // pred_region
      _
    $region37: #{tpu_custom_call.1} parent=1 // pred_fallthru
      _
    // Predicated region
    $region38: #{tpu_custom_call.1} parent=1 // pred_check
      _
    $region39: #{tpu_custom_call.1} parent=1 // pred_check_branch
      %53 = sbr.rel (0) target = $region41
    $region40: #{tpu_custom_call.1} parent=1 // pred_region
      %54 = dma.done [#allocation3], 112
    $region41: #{tpu_custom_call.1} parent=1 // pred_fallthru
      _
    // Predicated region
    $region42: #{tpu_custom_call.1} parent=1 // pred_check
      _
    $region43: #{tpu_custom_call.1} parent=1 // pred_check_branch
      %56 = sbr.rel (0) target = $region45
    $region44: #{tpu_custom_call.1} parent=1 // pred_region
      %57 = dma.done [#allocation5], 256
    $region45: #{tpu_custom_call.1} parent=1 // pred_fallthru
      _
    %v58 = vld [vmem:[%s1] sm:$0xff]
    %v59 = vld [vmem:[%s1 + $0x8] sm:$0xff]
    %v60 = vld [vmem:[%s1 + $0x10] sm:$0xff]
    %v61 = vld [vmem:[%s1 + $0x18] sm:$0xf]
    %v62 = vld [vmem:[#allocation2] sm:$0x7f]
    %v64 = vlaneseq
    %v65 = vshrl.u32 %v64, 7
    %v66 = vsub.s32 0, %v65
    %v67 = vrot.slane %v62, %v66
    %v68 = vlaneseq
    %v69 = vshrl.u32 %v68, 7
    %v70 = vsub.s32 1, %v69
    %v71 = vrot.slane %v62, %v70
    %v72 = vlaneseq
    %v73 = vshrl.u32 %v72, 7
    %v74 = vsub.s32 2, %v73
    %v75 = vrot.slane %v62, %v74
    %v76 = vlaneseq
    %v77 = vshrl.u32 %v76, 7
    %v78 = vsub.s32 3, %v77
    %v79 = vrot.slane %v62, %v78
    %v80 = vlaneseq
    %v81 = vshrl.u32 %v80, 7
    %v82 = vsub.s32 4, %v81
    %v83 = vrot.slane %v62, %v82
    %v84 = vlaneseq
    %v85 = vshrl.u32 %v84, 7
    %v86 = vsub.s32 5, %v85
    %v87 = vrot.slane %v62, %v86
    %v88 = vlaneseq
    %v89 = vshrl.u32 %v88, 7
    %v90 = vsub.s32 6, %v89
    %v91 = vrot.slane %v62, %v90
    %v93 = vcombine.low %v67, %v71
    %v94 = vcombine.low %v75, %v79
    %v95 = vcombine.low %v83, %v87
    %v99 = vmul.f32 %v58, %v93
    %v100 = vmul.f32 %v59, %v94
    %v101 = vmul.f32 %v60, %v95
    %v102 = vmul.f32 %v61, %v91
    %v106 = vcombine.high %v99, %v99
    %v107 = vcombine.high %v100, %v100
    %v108 = vcombine.high %v101, %v101
    %vm112 = vcmask 1043456
    %v113 = vsel %vm112, %v99, 0.0
    %v114 = vsel %vm112, %v106, 0.0
    %v115 = vadd.f32 %v113, %v114
    %v116 = vsel %vm112, %v100, 0.0
    %v117 = vadd.f32 %v115, %v116
    %v118 = vsel %vm112, %v107, 0.0
    %v119 = vadd.f32 %v117, %v118
    %v120 = vsel %vm112, %v101, 0.0
    %v121 = vadd.f32 %v119, %v120
    %v122 = vsel %vm112, %v108, 0.0
    %v123 = vadd.f32 %v121, %v122
    %vm124 = vcmask 125952
    %v125 = vsel %vm124, %v102, 0.0
    %v126 = vadd.f32 %v123, %v125
    %127 = vadd.xlane.f32.xlu0 %v126
    %v128 = vpop.xlane.xlu0 %127
    %v129 = vld [vmem:[%s2] sm:$0xf]
    %v130 = vadd.f32 %v128, %v129
    %v131 = vtanh.pop %v130
    %v132 = vmul.f32 %v131, 0.5
    %v133 = vand.u32 2147483647, %v132
    %vm134 = vcmp.le.f32.partialorder %v133, 0.7853982
    %vm135 = vcmp.lt.s32.totalorder %v132, 0
    %v136 = vand.u32 %v132, 2139095040
    %v137 = vshrl.u32 %v136, 23
    %v138 = vsub.s32 %v137, 127
    %v139 = vand.u32 2147483647, %v132
    %v140 = vand.u32 %v139, 8388607
    %v141 = vor.u32 %v140, 8388608
    %v142 = vsub.s32 0, %v141
    %v143 = vadd.s32 %v138, 1
    %vm144 = vcmp.gt.s32.totalorder %v143, 0
    %v145 = vsel %vm144, %v143, 0
    %v146 = vshrl.u32 %v145, 5
    %v147 = vand.u32 %v145, 31
    %v148 = vsub.s32 32, %v147
    %v149 = vshrl.u32 683565275, %v148
    %v150 = vshll.u32 683565275, %v147
    %v151 = vshrl.u32 2475754826, %v148
    %v152 = vor.u32 %v150, %v151
    %v153 = vshll.u32 2475754826, %v147
    %v154 = vshrl.u32 2131351028, %v148
    %v155 = vor.u32 %v153, %v154
    %v156 = vshll.u32 2131351028, %v147
    %v157 = vshrl.u32 2102212464, %v148
    %v158 = vor.u32 %v156, %v157
    %v159 = vshll.u32 2102212464, %v147
    %v160 = vshrl.u32 920167782, %v148
    %v161 = vor.u32 %v159, %v160
    %v162 = vshll.u32 920167782, %v147
    %v163 = vshrl.u32 1326507024, %v148
    %v164 = vor.u32 %v162, %v163
    %vm165 = vcmp.lt.s32.totalorder %v146, 1
    %vm166 = vcmp.lt.s32.totalorder %v146, 2
    %vm167 = vcmp.lt.s32.totalorder %v146, 3
    %vm168 = vcmp.lt.s32.totalorder %v146, 4
    %v169 = vsel %vm165, %v149, %v152
    %v170 = vsel %vm168, %v158, 2102212464
    %v171 = vsel %vm167, %v155, %v170
    %v172 = vsel %vm166, %v169, %v171
    %v173 = vsel %vm165, %v152, %v155
    %v174 = vsel %vm168, %v161, 920167782
    %v175 = vsel %vm167, %v158, %v174
    %v176 = vsel %vm166, %v173, %v175
    %v177 = vsel %vm165, %v155, %v158
    %v178 = vsel %vm168, %v164, 1326507024
    %v179 = vsel %vm167, %v161, %v178
    %v180 = vsel %vm166, %v177, %v179
    %v181 = vshll.u32 %v141, 8
    %v182 = vmul.u32.u64.compose %v181, %v180
    %v183 = vextract.low.u32 %v182
    %v184 = vextract.high.u32 %v182
    %v185 = vmul.u32.u64.compose %v181, %v176
    %v186 = vextract.low.u32 %v185
    %v187 = vextract.high.u32 %v185
    %v188 = vmul.u32 %v181, %v172
    %v189 = vadd.s32 %v184, %v186
    %vm190 = vc.u32 %v184, %v186
    %v191 = vadd.s32 %v187, 1
    %v192 = vsel %vm190, %v191, %v187
    %v193 = vadd.s32 %v188, %v192
    %v194 = vadd.s32 %v193, 536870912
    %v195 = vshrl.u32 %v194, 30
    %v196 = vshll.u32 %v195, 30
    %v197 = vsub.s32 %v193, %v196
    %vm198 = vcmp.lt.s32.totalorder %v197, 0
    %v199 = vsub.s32 0, %v197
    %v200 = vsel %vm198, %v199, %v197
    %v201 = vclz %v200
    %v202 = vsub.s32 %v201, 2
    %vm203 = vcmp.gt.s32.totalorder 0, %v202
    %v204 = vsel %vm203, 0, %v202
    %v205 = vsub.s32 32, %v204
    %v206 = vshll.u32 %v197, %v204
    %v207 = vshrl.u32 %v189, %v205
    %v208 = vor.u32 %v206, %v207
    %v209 = vsub.s32 4294967266, %v204
    %v210 = vadd.s32 %v209, 127
    %v211 = vshll.u32 %v210, 23
    %v212 = vor.u32 4788187, %v211
    %v213 = vand.u32 2147483647, %v212
    %v215 = vcvt.s32.f32 %v208
    %v216 = vmul.f32 %v215, %v213
    %v217 = vxor.u32 %v216, 2147483648
    %v218 = vsel %vm135, %v217, %v216
    %v219 = vsub.s32 4, %v195
    %v220 = vsel %vm135, %v219, %v195
    %v221 = vsel %vm134, %v132, %v218
    %v222 = vsel %vm134, 0, %v220
    %v223 = vcosq.f32.pop %v221
    %v224 = vsinq.f32.pop %v221
    %vm225 = vweird.f32 %v132
    %v226 = vand.u32 %v222, 3
    %vm227 = vcmp.lt.s32.totalorder %v226, 2
    %vm228 = vcmp.eq.s32.totalorder %v226, 0
    %v229 = vxor.u32 %v224, 2147483648
    %v230 = vsel %vm228, %v223, %v229
    %vm231 = vcmp.eq.s32.totalorder %v226, 2
    %v232 = vxor.u32 %v223, 2147483648
    %v233 = vsel %vm231, %v232, %v224
    %v234 = vsel %vm227, %v230, %v233
    %v235 = vsel %vm225, nan, %v234
    %v236 = vand.u32 2147483647, %v132
    %vm237 = vcmp.le.f32.partialorder %v236, 0.7853982
    %vm238 = vcmp.lt.s32.totalorder %v132, 0
    %v239 = vand.u32 %v132, 2139095040
    %v240 = vshrl.u32 %v239, 23
    %v241 = vsub.s32 %v240, 127
    %v242 = vand.u32 2147483647, %v132
    %v243 = vand.u32 %v242, 8388607
    %v244 = vor.u32 %v243, 8388608
    %v245 = vsub.s32 0, %v244
    %v246 = vadd.s32 %v241, 1
    %vm247 = vcmp.gt.s32.totalorder %v246, 0
    %v248 = vsel %vm247, %v246, 0
    %v249 = vshrl.u32 %v248, 5
    %v250 = vand.u32 %v248, 31
    %v251 = vsub.s32 32, %v250
    %v252 = vshrl.u32 683565275, %v251
    %v253 = vshll.u32 683565275, %v250
    %v254 = vshrl.u32 2475754826, %v251
    %v255 = vor.u32 %v253, %v254
    %v256 = vshll.u32 2475754826, %v250
    %v257 = vshrl.u32 2131351028, %v251
    %v258 = vor.u32 %v256, %v257
    %v259 = vshll.u32 2131351028, %v250
    %v260 = vshrl.u32 2102212464, %v251
    %v261 = vor.u32 %v259, %v260
    %v262 = vshll.u32 2102212464, %v250
    %v263 = vshrl.u32 920167782, %v251
    %v264 = vor.u32 %v262, %v263
    %v265 = vshll.u32 920167782, %v250
    %v266 = vshrl.u32 1326507024, %v251
    %v267 = vor.u32 %v265, %v266
    %vm268 = vcmp.lt.s32.totalorder %v249, 1
    %vm269 = vcmp.lt.s32.totalorder %v249, 2
    %vm270 = vcmp.lt.s32.totalorder %v249, 3
    %vm271 = vcmp.lt.s32.totalorder %v249, 4
    %v272 = vsel %vm268, %v252, %v255
    %v273 = vsel %vm271, %v261, 2102212464
    %v274 = vsel %vm270, %v258, %v273
    %v275 = vsel %vm269, %v272, %v274
    %v276 = vsel %vm268, %v255, %v258
    %v277 = vsel %vm271, %v264, 920167782
    %v278 = vsel %vm270, %v261, %v277
    %v279 = vsel %vm269, %v276, %v278
    %v280 = vsel %vm268, %v258, %v261
    %v281 = vsel %vm271, %v267, 1326507024
    %v282 = vsel %vm270, %v264, %v281
    %v283 = vsel %vm269, %v280, %v282
    %v284 = vshll.u32 %v244, 8
    %v285 = vmul.u32.u64.compose %v284, %v283
    %v286 = vextract.low.u32 %v285
    %v287 = vextract.high.u32 %v285
    %v288 = vmul.u32.u64.compose %v284, %v279
    %v289 = vextract.low.u32 %v288
    %v290 = vextract.high.u32 %v288
    %v291 = vmul.u32 %v284, %v275
    %v292 = vadd.s32 %v287, %v289
    %vm293 = vc.u32 %v287, %v289
    %v294 = vadd.s32 %v290, 1
    %v295 = vsel %vm293, %v294, %v290
    %v296 = vadd.s32 %v291, %v295
    %v297 = vadd.s32 %v296, 536870912
    %v298 = vshrl.u32 %v297, 30
    %v299 = vshll.u32 %v298, 30
    %v300 = vsub.s32 %v296, %v299
    %vm301 = vcmp.lt.s32.totalorder %v300, 0
    %v302 = vsub.s32 0, %v300
    %v303 = vsel %vm301, %v302, %v300
    %v304 = vclz %v303
    %v305 = vsub.s32 %v304, 2
    %vm306 = vcmp.gt.s32.totalorder 0, %v305
    %v307 = vsel %vm306, 0, %v305
    %v308 = vsub.s32 32, %v307
    %v309 = vshll.u32 %v300, %v307
    %v310 = vshrl.u32 %v292, %v308
    %v311 = vor.u32 %v309, %v310
    %v312 = vsub.s32 4294967266, %v307
    %v313 = vadd.s32 %v312, 127
    %v314 = vshll.u32 %v313, 23
    %v315 = vor.u32 4788187, %v314
    %v316 = vand.u32 2147483647, %v315
    %v318 = vcvt.s32.f32 %v311
    %v319 = vmul.f32 %v318, %v316
    %v320 = vxor.u32 %v319, 2147483648
    %v321 = vsel %vm238, %v320, %v319
    %v322 = vsub.s32 4, %v298
    %v323 = vsel %vm238, %v322, %v298
    %v324 = vsel %vm237, %v132, %v321
    %v325 = vsel %vm237, 0, %v323
    %v326 = vcosq.f32.pop %v324
    %v327 = vsinq.f32.pop %v324
    %vm328 = vweird.f32 %v132
    %v329 = vadd.s32 %v325, 3
    %v330 = vand.u32 %v329, 3
    %vm331 = vcmp.lt.s32.totalorder %v330, 2
    %vm332 = vcmp.eq.s32.totalorder %v330, 0
    %v333 = vxor.u32 %v327, 2147483648
    %v334 = vsel %vm332, %v326, %v333
    %vm335 = vcmp.eq.s32.totalorder %v330, 2
    %v336 = vxor.u32 %v326, 2147483648
    %v337 = vsel %vm335, %v336, %v327
    %v338 = vsel %vm331, %v334, %v337
    %v339 = vsel %vm328, nan, %v338
    %v340 = vld [vmem:[%s4] sm:$0xf]
    %342 = vset.pattern.permute.xlu0 0
    %343 = vperm.xlu0 %342, %v235
    %v344 = vpop.permute.xlu0 %343
    %v346 = vmul.f32 %v340, %v344
    %v347 = vld [vmem:[%s5] sm:$0xf]
    %349 = vset.pattern.permute.xlu0 0
    %350 = vperm.xlu0 %349, %v339
    %v351 = vpop.permute.xlu0 %350
    %v353 = vmul.f32 %v347, %v351
    %v354 = vadd.f32 %v346, %v353
    %v356 = vrot.slane %v354, 1
    %v358 = vmul.f32 %v354, %v356
    %v359 = vrot.slane %v354, 2
    %v361 = vmul.f32 %v358, %v359
    %v362 = vrot.slane %v354, 3
    %v364 = vmul.f32 %v361, %v362
    %v365 = vld [vmem:[#allocation4] sm:$0xff]
    %v366 = vld [vmem:[#allocation4 + $0x8] sm:$0xff]
    %v367 = vlaneseq
    %v368 = vshrl.u32 %v367, 7
    %v369 = vsub.s32 0, %v368
    %v370 = vrot.slane %v364, %v369
    %v371 = vmul.f32 %v365, %v370
    %v372 = vmul.f32 %v366, %v370
    %vm373 = vcmask 130048
    %v374 = vsel %vm373, %v371, 0.0
    %375 = vadd.xlane.f32.xlu0 %v374
    %v376 = vpop.xlane.xlu0 %375
    %v377 = vsel %vm373, %v372, 0.0
    %378 = vadd.xlane.f32.xlu0 %v377
    %v379 = vpop.xlane.xlu0 %378
    %v380 = vmul.f32 %v376, %v376
    %v381 = vmul.f32 %v379, %v379
    %v382 = vld [vmem:[%s6] sm:$0xff]
    %v383 = vld [vmem:[%s6 + $0x8] sm:$0xff]
    %v384 = vmul.f32 %v382, %v380
    %v385 = vmul.f32 %v383, %v381
    %vm386 = vcmask 31744
    %v387 = vsel %vm386, %v384, 0.0
    %v388 = vsel %vm386, %v385, 0.0
    %v389 = vadd.f32 %v387, %v388
    %v390 = vrot.slane %v389, 4
    %v391 = vadd.f32 %v389, %v390
    %v392 = vrot.slane %v391, 2
    %v393 = vadd.f32 %v391, %v392
    %v394 = vrot.slane %v393, 1
    %v395 = vadd.f32 %v393, %v394
    %v396 = vld [vmem:[%s7] sm:$0x3]
    %v397 = vmul.f32 %v396, %v395
    %vm398 = vcmask 25600
    %v399 = vsel %vm398, %v397, 0.0
    %400 = vadd.xlane.f32.xlu0 %v399
    %v401 = vpop.xlane.xlu0 %400
    %v402 = vld [vmem:[%s8] sm:$0x3]
    %v403 = vadd.f32 %v401, %v402
    %v404 = vtanh.pop %v403
    %vm405 = vcmask 1024
    %406 = vst.msk [vmem:[%s9] sm:$0x3] %vm405, %v404
    // Predicated region
    $region46: #{tpu_custom_call.1} parent=1 // pred_check
      _
    $region47: #{tpu_custom_call.1} parent=1 // pred_check_branch
      %408 = sbr.rel (0) target = $region49
    $region48: #{tpu_custom_call.1} parent=1 // pred_region
      _
    $region49: #{tpu_custom_call.1} parent=1 // pred_fallthru
      _
    // Predicated region
    $region50: #{tpu_custom_call.1} parent=1 // pred_check
      _
    $region51: #{tpu_custom_call.1} parent=1 // pred_check_branch
      %410 = sbr.rel (0) target = $region53
    $region52: #{tpu_custom_call.1} parent=1 // pred_region
      _
    $region53: #{tpu_custom_call.1} parent=1 // pred_fallthru
      _
    %411 = vsyncpa [#allocation3], 1
    %412 = vsyncpa [#allocation5], 1

</llo_original>
